<compile_context>
chip_gen: v7x
topology: tpu7x:2x2x1
jax: 0.10.0
libtpu: 0.0.40
codegen_flags: <defaults>
</compile_context>

<pallas_src>
import jax
import jax.numpy as jnp
from jax.experimental import pallas as pl
from jax.experimental.pallas import tpu as pltpu


# ---------------- Pallas kernels ----------------

def _edge_kernel(xe_ref, w1_ref, b1_ref, w2_ref, b2_ref, out_ref):
    # node_layer_1 on concat([x[col], edge_attr]):
    #   Linear(no bias)+BN (folded) -> ReLU -> Linear(no bias)+BN (folded)
    h = jnp.dot(xe_ref[...], w1_ref[...], preferred_element_type=jnp.float32)
    h = jnp.maximum(h + b1_ref[...], 0.0)
    o = jnp.dot(h.astype(jnp.bfloat16), w2_ref[...],
                preferred_element_type=jnp.float32)
    out_ref[...] = (o + b2_ref[...]).astype(out_ref.dtype)


def _node_kernel(start_ref, nchunk_ref, row_ref, invc_ref, eout_ref, xu_ref,
                 w3ac_ref, w3b_ref, b3_ref, w4_ref, b4_ref, out_ref, agg_ref):
    # grid = (node tiles [parallel], edge chunks [arbitrary]).
    i = pl.program_id(0)
    k = pl.program_id(1)

    @pl.when(k == 0)
    def _init():
        agg_ref[...] = jnp.zeros_like(agg_ref)

    # Only accumulate chunks that belong to this node tile's edge range
    # (edges are pre-sorted by row; start_ref/nchunk_ref are scalar-prefetched).
    @pl.when(k < nchunk_ref[i])
    def _accumulate():
        tile_n = out_ref.shape[0]
        tile_e = row_ref.shape[1]
        # one-hot scatter mask built in-registers; row values are global node
        # ids (padding rows carry -1 and never match).
        node_ids = (jax.lax.broadcasted_iota(jnp.int32, (tile_n, tile_e), 0)
                    + i * tile_n)
        mask = (row_ref[...] == node_ids).astype(jnp.bfloat16)     # [tile_n, tile_e]
        agg_ref[...] += jnp.dot(mask, eout_ref[...],
                                preferred_element_type=jnp.float32)

    @pl.when(k == pl.num_programs(1) - 1)
    def _epilogue():
        agg = agg_ref[...] * invc_ref[...]                         # f32 mean
        # node_layer_2 on concat([x, agg, u[batch]]):
        h = jnp.dot(xu_ref[...], w3ac_ref[...],
                    preferred_element_type=jnp.float32)
        h += jnp.dot(agg.astype(jnp.bfloat16), w3b_ref[...],
                     preferred_element_type=jnp.float32)
        h = jnp.maximum(h + b3_ref[...], 0.0)
        o = jnp.dot(h.astype(jnp.bfloat16), w4_ref[...],
                    preferred_element_type=jnp.float32)
        out_ref[...] = o + b4_ref[...]


# ---------------- wrappers ----------------

def _full(shape):
    nd = len(shape)
    return pl.BlockSpec(shape, lambda *_: (0,) * nd)


def _pick_tiles(n, max_tile, *, gran, min_tiles=1):
    """Balanced row tiling: tile is a multiple of `gran`, total pad = tile *
    ntiles, over-pad bounded by ~ntiles*gran (no rounding up to max_tile)."""
    ng = -(-n // gran)                       # number of gran-row groups
    max_g = max(max_tile // gran, 1)
    ntiles = max(min_tiles, -(-ng // max_g))
    ntiles = max(min(ntiles, ng), 1)         # each tile keeps >= gran real rows
    tile_g = -(-ng // ntiles)
    tile = tile_g * gran
    return tile * ntiles, tile, ntiles


_VMEM_LIMIT = 32 * 1024 * 1024  # explicit budget; fits v5e/v6e/v7x scoped VMEM


def edge_mlp(xe, w1, b1, w2, b2, *, tile_e):
    e_pad, k1 = xe.shape
    h = w1.shape[1]
    return pl.pallas_call(
        _edge_kernel,
        out_shape=jax.ShapeDtypeStruct((e_pad, h), jnp.bfloat16),
        grid=(e_pad // tile_e,),
        in_specs=[
            pl.BlockSpec((tile_e, k1), lambda i: (i, 0)),
            _full(w1.shape), _full(b1.shape),
            _full(w2.shape), _full(b2.shape),
        ],
        out_specs=pl.BlockSpec((tile_e, h), lambda i: (i, 0)),
        compiler_params=pltpu.CompilerParams(
            dimension_semantics=("parallel",),
            vmem_limit_bytes=_VMEM_LIMIT),
    )(xe, w1, b1, w2, b2)


def node_mlp(start_blk, nchunk, row_p, invc_p, eout, xu,
             w3ac, w3b, b3, w4, b4, *, tile_n, tile_e, k_steps):
    n_pad, k2 = xu.shape
    e_pad, h = eout.shape
    n_blocks = e_pad // tile_e

    # Data-dependent block indices: each node tile starts at its own edge
    # chunk. Clamped for skipped (k >= nchunk) steps; pl.when masks compute.
    def row_map(i, k, sb, nc):
        return (0, jnp.minimum(sb[i] + k, n_blocks - 1))

    def eout_map(i, k, sb, nc):
        return (jnp.minimum(sb[i] + k, n_blocks - 1), 0)

    def node_map(i, k, sb, nc):
        return (i, 0)

    grid_spec = pltpu.PrefetchScalarGridSpec(
        num_scalar_prefetch=2,
        grid=(n_pad // tile_n, k_steps),
        in_specs=[
            pl.BlockSpec((1, tile_e), row_map),        # sorted row ids [1, E]
            pl.BlockSpec((tile_n, 1), node_map),       # 1/count per node
            pl.BlockSpec((tile_e, h), eout_map),       # edge_out chunk
            pl.BlockSpec((tile_n, k2), node_map),      # concat([x, u[batch]])
            _full(w3ac.shape), _full(w3b.shape), _full(b3.shape),
            _full(w4.shape), _full(b4.shape),
        ],
        out_specs=pl.BlockSpec((tile_n, h), node_map),
        scratch_shapes=[pltpu.VMEM((tile_n, h), jnp.float32)],
    )
    return pl.pallas_call(
        _node_kernel,
        out_shape=jax.ShapeDtypeStruct((n_pad, h), jnp.float32),
        grid_spec=grid_spec,
        compiler_params=pltpu.CompilerParams(
            dimension_semantics=("parallel", "arbitrary"),
            vmem_limit_bytes=_VMEM_LIMIT),
    )(start_blk, nchunk, row_p, invc_p, eout, xu, w3ac, w3b, b3, w4, b4)


# ---------------- parameter setup (deterministic, synthetic) ----------------

def init_params(key, fx, fe, fu, h, eps=1e-5):
    ks = jax.random.split(key, 8)

    def lin(k, fin, fout):  # stored as [in, out] (= torch weight.T)
        lim = 1.0 / jnp.sqrt(fin)
        return jax.random.uniform(k, (fin, fout), jnp.float32, -lim, lim)

    def bn(k, hh):
        kg, kb, km, kv = jax.random.split(k, 4)
        gamma = jax.random.uniform(kg, (hh,), jnp.float32, 0.5, 1.5)
        beta = jax.random.normal(kb, (hh,), jnp.float32) * 0.1
        mean = jax.random.normal(km, (hh,), jnp.float32) * 0.1
        var = jax.random.uniform(kv, (hh,), jnp.float32, 0.5, 1.5)
        scale = gamma / jnp.sqrt(var + eps)
        shift = beta - mean * scale
        return scale, shift

    w1 = lin(ks[0], fx + fe, h); s1, sh1 = bn(ks[1], h)
    w2 = lin(ks[2], h, h);       s2, sh2 = bn(ks[3], h)
    w3 = lin(ks[4], fx + h + fu, h); s3, sh3 = bn(ks[5], h)
    w4 = lin(ks[6], h, h);       s4, sh4 = bn(ks[7], h)

    raw = dict(w1=w1, s1=s1, sh1=sh1, w2=w2, s2=s2, sh2=sh2,
               w3=w3, s3=s3, sh3=sh3, w4=w4, s4=s4, sh4=sh4)

    # Fold BN (eval mode) into the weights, stack weights for the concatenated
    # operands, cast MXU operands to bf16 (biases stay f32).
    w3a, w3b, w3c = w3[:fx], w3[fx:fx + h], w3[fx + h:]
    p = dict(
        w1=(w1 * s1).astype(jnp.bfloat16),  b1=sh1.reshape(1, h),
        w2=(w2 * s2).astype(jnp.bfloat16),  b2=sh2.reshape(1, h),
        w3ac=(jnp.concatenate([w3a, w3c], axis=0) * s3).astype(jnp.bfloat16),
        w3b=(w3b * s3).astype(jnp.bfloat16), b3=sh3.reshape(1, h),
        w4=(w4 * s4).astype(jnp.bfloat16),  b4=sh4.reshape(1, h),
    )
    return p, raw


# ---------------- full forward (glue + kernels) ----------------

def node_model_forward(p, x, edge_index, edge_attr, u, batch,
                       *, max_tile_e=1024, max_tile_n=256):
    n = x.shape[0]
    e = edge_attr.shape[0]
    row = edge_index[0].astype(jnp.int32)
    col = edge_index[1].astype(jnp.int32)

    # --- tiling (balanced, minimal over-pad; >=2 parallel tiles when possible)
    e_pad, tile_e, _ = _pick_tiles(e, max_tile_e, gran=128, min_tiles=2)
    n_pad, tile_n, n_tiles = _pick_tiles(n, max_tile_n, gran=16, min_tiles=2)

    # --- sort edges by destination node so every node tile touches a
    #     contiguous range of edge chunks (scalar-prefetched offsets below).
    perm = jnp.argsort(row)
    row_s = row[perm]

    # glue: gathers + concatenation (kept in XLA; feature widths are tiny)
    xe = jnp.concatenate([x[col[perm]], edge_attr[perm]],
                         axis=1).astype(jnp.bfloat16)               # [E, Fx+Fe]
    xu = jnp.concatenate([x, u[batch]], axis=1).astype(jnp.bfloat16)  # [N, Fx+Fu]

    # fused constant pads (no scatter-into-zeros HBM copies)
    xe_p = jnp.pad(xe, ((0, e_pad - e), (0, 0)))
    row_p = jnp.pad(row_s, (0, e_pad - e),
                    constant_values=-1).reshape(1, e_pad)           # -1 = no node
    xu_p = jnp.pad(xu, ((0, n_pad - n), (0, 0)))

    counts = jnp.zeros((n,), jnp.float32).at[row].add(1.0)
    invc = 1.0 / jnp.maximum(counts, 1.0)
    invc_p = jnp.pad(invc, (0, n_pad - n),
                     constant_values=1.0).reshape(n_pad, 1)

    # per-node-tile edge-chunk ranges (scalar-prefetch operands).
    # NOTE: grid sizing uses concrete edge indices (host-side), so this wrapper
    # is meant to be called outside jit (as in the original module's usage).
    tile_bounds = jnp.arange(n_tiles + 1, dtype=jnp.int32) * tile_n
    edge_bounds = jnp.searchsorted(row_s, tile_bounds).astype(jnp.int32)
    start_blk = (edge_bounds[:-1] // tile_e).astype(jnp.int32)
    end_blk = ((edge_bounds[1:] + tile_e - 1) // tile_e).astype(jnp.int32)
    nchunk = (end_blk - start_blk).astype(jnp.int32)
    k_steps = max(int(jnp.max(nchunk)), 1)

    # kernel 1: node_layer_1 on edges (big parallel row tiles)
    eout = edge_mlp(xe_p, p["w1"], p["b1"], p["w2"], p["b2"], tile_e=tile_e)

    # kernel 2: in-kernel scatter_mean over this tile's edge chunks
    #           (E-reduction axis + f32 accumulator) + node_layer_2
    out = node_mlp(start_blk, nchunk, row_p, invc_p, eout, xu_p,
                   p["w3ac"], p["w3b"], p["b3"], p["w4"], p["b4"],
                   tile_n=tile_n, tile_e=tile_e, k_steps=k_steps)
    return out[:n]


def reference_forward(raw, x, edge_index, edge_attr, u, batch):
    # Pure-f32 reference with explicit BN affine (eval mode).
    n = x.shape[0]
    row, col = edge_index[0], edge_index[1]
    h = jnp.concatenate([x[col], edge_attr], axis=1) @ raw["w1"]
    h = jnp.maximum(h * raw["s1"] + raw["sh1"], 0.0)
    eout = (h @ raw["w2"]) * raw["s2"] + raw["sh2"]
    counts = jnp.zeros((n,), jnp.float32).at[row].add(1.0)
    agg = jnp.zeros((n, eout.shape[1]), jnp.float32).at[row].add(eout)
    agg = agg / jnp.maximum(counts, 1.0)[:, None]
    h2 = jnp.concatenate([x, agg, u[batch]], axis=1) @ raw["w3"]
    h2 = jnp.maximum(h2 * raw["s3"] + raw["sh3"], 0.0)
    return (h2 @ raw["w4"]) * raw["s4"] + raw["sh4"]


if __name__ == "__main__":
    Fx, Fe, Fu, H = 4, 3, 5, 32      # in_features = (4, 3, 5), out_features = 32
    N, E, B = 8, 16, 2

    key = jax.random.PRNGKey(0)
    k_p, k_x, k_e, k_u, k_r, k_c = jax.random.split(key, 6)

    params, raw = init_params(k_p, Fx, Fe, Fu, H)
    x = jax.random.normal(k_x, (N, Fx), jnp.float32)
    edge_attr = jax.random.normal(k_e, (E, Fe), jnp.float32)
    u = jax.random.normal(k_u, (B, Fu), jnp.float32)
    row = jax.random.randint(k_r, (E,), 0, N)
    col = jax.random.randint(k_c, (E,), 0, N)
    edge_index = jnp.stack([row, col], axis=0)                 # [2, E]
    batch = jnp.concatenate([jnp.zeros(N // 2, jnp.int32),
                             jnp.ones(N - N // 2, jnp.int32)])  # [N]

    out = node_model_forward(params, x, edge_index, edge_attr, u, batch)
    out = jax.block_until_ready(out)

    ref = reference_forward(raw, x, edge_index, edge_attr, u, batch)
    assert out.shape == (N, H)
    # Kernel uses bf16 MXU operands (f32 accumulation/epilogue); tolerance
    # accounts for bf16 rounding vs the f32 reference.
    assert jnp.allclose(out, ref, rtol=5e-2, atol=5e-2), "mismatch vs reference"

    print("KERNEL_OK")
</pallas_src>

<mosaic_0001>
module attributes {stable_mosaic.version = 11 : i64} {
  func.func @_edge_kernel(%arg0: i32, %arg1: memref<128x7xbf16, #tpu.memory_space<vmem>>, %arg2: memref<7x32xbf16, #tpu.memory_space<vmem>>, %arg3: memref<1x32xf32, #tpu.memory_space<vmem>>, %arg4: memref<32x32xbf16, #tpu.memory_space<vmem>>, %arg5: memref<1x32xf32, #tpu.memory_space<vmem>>, %arg6: memref<128x32xbf16, #tpu.memory_space<vmem>>) attributes {dimension_semantics = [#tpu.dimension_semantics<parallel>], iteration_bounds = array<i64: 1>, scalar_prefetch = 0 : i64, scratch_operands = 0 : i64, tpu.core_type = #tpu.core_type<tc>, window_params = [{transform_indices = @transform_0, window_bounds = array<i64: 128, 7>}, {pipeline_mode = #tpu.pipeline_mode<synchronous>, transform_indices = @transform_1, window_bounds = array<i64: 7, 32>}, {pipeline_mode = #tpu.pipeline_mode<synchronous>, transform_indices = @transform_2, window_bounds = array<i64: 1, 32>}, {pipeline_mode = #tpu.pipeline_mode<synchronous>, transform_indices = @transform_3, window_bounds = array<i64: 32, 32>}, {pipeline_mode = #tpu.pipeline_mode<synchronous>, transform_indices = @transform_4, window_bounds = array<i64: 1, 32>}, {transform_indices = @transform_5, window_bounds = array<i64: 128, 32>}]} {
    %c0 = arith.constant 0 : index
    %c0_0 = arith.constant 0 : index
    %0 = vector.load %arg1[%c0, %c0_0] : memref<128x7xbf16, #tpu.memory_space<vmem>>, vector<128x7xbf16>
    %c0_1 = arith.constant 0 : index
    %c0_2 = arith.constant 0 : index
    %1 = vector.load %arg2[%c0_1, %c0_2] : memref<7x32xbf16, #tpu.memory_space<vmem>>, vector<7x32xbf16>
    %cst = arith.constant dense<0.000000e+00> : vector<128x32xf32>
    %2 = tpu.matmul %0, %1, %cst {dimension_numbers = #tpu.dot_dimension_numbers<[1], [0], [0], [1], [0, 0, 1, 1], [], []>} : vector<128x7xbf16>, vector<7x32xbf16>, vector<128x32xf32> -> vector<128x32xf32>
    %c0_3 = arith.constant 0 : index
    %c0_4 = arith.constant 0 : index
    %3 = vector.load %arg3[%c0_3, %c0_4] : memref<1x32xf32, #tpu.memory_space<vmem>>, vector<1x32xf32>
    %4 = vector.broadcast %3 : vector<1x32xf32> to vector<128x32xf32>
    %5 = arith.addf %2, %4 : vector<128x32xf32>
    %cst_5 = arith.constant 0.000000e+00 : f32
    %6 = vector.broadcast %cst_5 : f32 to vector<128x32xf32>
    %7 = arith.maximumf %5, %6 : vector<128x32xf32>
    %8 = arith.truncf %7 : vector<128x32xf32> to vector<128x32xbf16>
    %c0_6 = arith.constant 0 : index
    %c0_7 = arith.constant 0 : index
    %9 = vector.load %arg4[%c0_6, %c0_7] : memref<32x32xbf16, #tpu.memory_space<vmem>>, vector<32x32xbf16>
    %cst_8 = arith.constant dense<0.000000e+00> : vector<128x32xf32>
    %10 = tpu.matmul %8, %9, %cst_8 {dimension_numbers = #tpu.dot_dimension_numbers<[1], [0], [0], [1], [0, 0, 1, 1], [], []>} : vector<128x32xbf16>, vector<32x32xbf16>, vector<128x32xf32> -> vector<128x32xf32>
    %c0_9 = arith.constant 0 : index
    %c0_10 = arith.constant 0 : index
    %11 = vector.load %arg5[%c0_9, %c0_10] : memref<1x32xf32, #tpu.memory_space<vmem>>, vector<1x32xf32>
    %12 = vector.broadcast %11 : vector<1x32xf32> to vector<128x32xf32>
    %13 = arith.addf %10, %12 : vector<128x32xf32>
    %14 = arith.truncf %13 : vector<128x32xf32> to vector<128x32xbf16>
    %c0_11 = arith.constant 0 : index
    %c0_12 = arith.constant 0 : index
    %15 = vector.load %arg6[%c0_11, %c0_12] : memref<128x32xbf16, #tpu.memory_space<vmem>>, vector<128x32xbf16>
    tpu.vector_store %arg6[%c0_11, %c0_12], %14 {strides = array<i32>} : memref<128x32xbf16, #tpu.memory_space<vmem>>, vector<128x32xbf16>,
    return
  }
  func.func @transform_0(%arg0: i32) -> (i32, i32) {
    %c0_i32 = arith.constant 0 : i32
    %c0_i32_0 = arith.constant 0 : i32
    return %arg0, %c0_i32 : i32, i32
  }
  func.func @transform_1(%arg0: i32) -> (i32, i32) {
    %c0_i32 = arith.constant 0 : i32
    %c0_i32_0 = arith.constant 0 : i32
    %c0_i32_1 = arith.constant 0 : i32
    return %c0_i32, %c0_i32_0 : i32, i32
  }
  func.func @transform_2(%arg0: i32) -> (i32, i32) {
    %c0_i32 = arith.constant 0 : i32
    %c0_i32_0 = arith.constant 0 : i32
    %c0_i32_1 = arith.constant 0 : i32
    return %c0_i32, %c0_i32_0 : i32, i32
  }
  func.func @transform_3(%arg0: i32) -> (i32, i32) {
    %c0_i32 = arith.constant 0 : i32
    %c0_i32_0 = arith.constant 0 : i32
    %c0_i32_1 = arith.constant 0 : i32
    return %c0_i32, %c0_i32_0 : i32, i32
  }
  func.func @transform_4(%arg0: i32) -> (i32, i32) {
    %c0_i32 = arith.constant 0 : i32
    %c0_i32_0 = arith.constant 0 : i32
    %c0_i32_1 = arith.constant 0 : i32
    return %c0_i32, %c0_i32_0 : i32, i32
  }
  func.func @transform_5(%arg0: i32) -> (i32, i32) {
    %c0_i32 = arith.constant 0 : i32
    %c0_i32_0 = arith.constant 0 : i32
    return %arg0, %c0_i32 : i32, i32
  }
}

</mosaic_0001>

<llo_original>
// kernel: tpu_custom_call.1
$region0: #{tpu_custom_call.1}
  #allocation0 [shape = 'u32[]', space=smem, size = 0x4, offset = 0x4, fixed_abs, tag = 'smem constant byte address 0x4 - core index']
  #allocation1 [shape = 'u32[144,128]{1,0:T(1,128)}', space=vmem, size = 0x12000, scoped, tag = 'internal scratch']
  %s0 = inlined_call_operand.vmem [shape: bf16[128,7], index: 0, kind: input, shape index: {}]
  %s1 = inlined_call_operand.vmem [shape: bf16[7,32], index: 1, kind: input, shape index: {}]
  %s2 = inlined_call_operand.vmem [shape: f32[1,32], index: 2, kind: input, shape index: {}]
  %s3 = inlined_call_operand.vmem [shape: bf16[32,32], index: 3, kind: input, shape index: {}]
  %s4 = inlined_call_operand.vmem [shape: f32[1,32], index: 4, kind: input, shape index: {}]
  %s5 = inlined_call_operand.vmem [shape: bf16[128,32], index: 5, kind: output, shape index: {}]
  %s6 = sld [smem:[#allocation0]]
  $region30: #{tpu_custom_call.1} parent=0
    _
  %s8 = ssub.s32 1, %s6
  %s9 = scalar_select 0, %s8, %s6
  // Predicated region
  $region2: #{tpu_custom_call.1} parent=0 // pred_check
    _
  $region3: #{tpu_custom_call.1} parent=0 // pred_check_branch
    %11 = sbr.rel (0) target = $region5
  $region4: #{tpu_custom_call.1} parent=0 // pred_region
    _
  $region5: #{tpu_custom_call.1} parent=0 // pred_fallthru
    _
  // Predicated region
  $region6: #{tpu_custom_call.1} parent=0 // pred_check
    _
  $region7: #{tpu_custom_call.1} parent=0 // pred_check_branch
    %13 = sbr.rel (0) target = $region9
  $region8: #{tpu_custom_call.1} parent=0 // pred_region
    _
  $region9: #{tpu_custom_call.1} parent=0 // pred_fallthru
    _
  // Predicated region
  $region10: #{tpu_custom_call.1} parent=0 // pred_check
    _
  $region11: #{tpu_custom_call.1} parent=0 // pred_check_branch
    %15 = sbr.rel (0) target = $region13
  $region12: #{tpu_custom_call.1} parent=0 // pred_region
    _
  $region13: #{tpu_custom_call.1} parent=0 // pred_fallthru
    _
  // Predicated region
  $region14: #{tpu_custom_call.1} parent=0 // pred_check
    _
  $region15: #{tpu_custom_call.1} parent=0 // pred_check_branch
    %17 = sbr.rel (0) target = $region17
  $region16: #{tpu_custom_call.1} parent=0 // pred_region
    _
  $region17: #{tpu_custom_call.1} parent=0 // pred_fallthru
    _
  // Predicated region
  $region18: #{tpu_custom_call.1} parent=0 // pred_check
    _
  $region19: #{tpu_custom_call.1} parent=0 // pred_check_branch
    %19 = sbr.rel (0) target = $region21
  $region20: #{tpu_custom_call.1} parent=0 // pred_region
    _
  $region21: #{tpu_custom_call.1} parent=0 // pred_fallthru
    _
  %v21 = vld [vmem:[%s0] sm:$0xf]
  %v22 = vld [vmem:[%s0 + $0x4] sm:$0xf]
  %v23 = vld [vmem:[%s0 + $0x8] sm:$0xf]
  %v24 = vld [vmem:[%s0 + $0xc] sm:$0xf]
  %v25 = vld [vmem:[%s0 + $0x10] sm:$0xf]
  %v26 = vld [vmem:[%s0 + $0x14] sm:$0xf]
  %v27 = vld [vmem:[%s0 + $0x18] sm:$0xf]
  %v28 = vld [vmem:[%s0 + $0x1c] sm:$0xf]
  %v29 = vld [vmem:[%s0 + $0x20] sm:$0xf]
  %v30 = vld [vmem:[%s0 + $0x24] sm:$0xf]
  %v31 = vld [vmem:[%s0 + $0x28] sm:$0xf]
  %v32 = vld [vmem:[%s0 + $0x2c] sm:$0xf]
  %v33 = vld [vmem:[%s0 + $0x30] sm:$0xf]
  %v34 = vld [vmem:[%s0 + $0x34] sm:$0xf]
  %v35 = vld [vmem:[%s0 + $0x38] sm:$0xf]
  %v36 = vld [vmem:[%s0 + $0x3c] sm:$0xf]
  %v37 = vld [vmem:[%s1] sm:$0xf]
  %v38 = vld [vmem:[%s2] sm:$0x1]
  %v40 = vlaneseq
  %v41 = vshrl.u32 %v40, 7
  %v42 = vsub.s32 0, %v41
  %v43 = vrot.slane %v38, %v42
  %v61 = vunpack.c.l.b16 %v21
  %v62 = vunpack.c.l.b16 %v22
  %v63 = vunpack.c.l.b16 %v23
  %v64 = vunpack.c.l.b16 %v24
  %v65 = vunpack.c.l.b16 %v25
  %v66 = vunpack.c.l.b16 %v26
  %v67 = vunpack.c.l.b16 %v27
  %v68 = vunpack.c.l.b16 %v28
  %v69 = vunpack.c.l.b16 %v29
  %v70 = vunpack.c.l.b16 %v30
  %v71 = vunpack.c.l.b16 %v31
  %v72 = vunpack.c.l.b16 %v32
  %v73 = vunpack.c.l.b16 %v33
  %v74 = vunpack.c.l.b16 %v34
  %v75 = vunpack.c.l.b16 %v35
  %v76 = vunpack.c.l.b16 %v36
  %v77 = vpack.c.b16 %v62, %v61
  %v78 = vpack.c.b16 %v64, %v63
  %v79 = vpack.c.b16 %v66, %v65
  %v80 = vpack.c.b16 %v68, %v67
  %v81 = vpack.c.b16 %v70, %v69
  %v82 = vpack.c.b16 %v72, %v71
  %v83 = vpack.c.b16 %v74, %v73
  %v84 = vpack.c.b16 %v76, %v75
  %vm85 = vcmask 56320
  %v87 = vsel %vm85, %v77, 0
  %v90 = vsel %vm85, %v78, 0
  %v93 = vsel %vm85, %v79, 0
  %v96 = vsel %vm85, %v80, 0
  %v99 = vsel %vm85, %v81, 0
  %v102 = vsel %vm85, %v82, 0
  %v105 = vsel %vm85, %v83, 0
  %v108 = vsel %vm85, %v84, 0
  %vm110 = vcmask 1042432
  %vm111 = vcmask 1043456
  %v112 = vsel %vm110, 4294967295, 65535
  %v113 = vsel %vm111, %v112, 0
  %v115 = vand.u32 %v37, %v113
  %117 = vmatprep.subr.bf16.mxu0 0
  %118 = vmatpush1.bf16.msra.mxu0 %v115
  %119 = vmatprep.subr.bf16.mxu0 0
  %120 = vmatpush1.bf16.msra.mxu0 0
  %121 = vmatprep.subr.bf16.mxu0 0
  %122 = vmatpush1.bf16.msra.mxu0 0
  %123 = vmatprep.subr.bf16.mxu0 0
  %124 = vmatpush1.bf16.msra.mxu0 0
  %125 = vmatprep.subr.bf16.mxu0 0
  %126 = vmatpush1.bf16.msra.mxu0 0
  %127 = vmatprep.subr.bf16.mxu0 0
  %128 = vmatpush1.bf16.msra.mxu0 0
  %129 = vmatprep.subr.bf16.mxu0 0
  %130 = vmatpush1.bf16.msra.mxu0 0
  %131 = vmatprep.subr.bf16.mxu0 0
  %132 = vmatpush1.bf16.msra.mxu0 0
  %133 = vmatprep.subr.bf16.mxu0 0
  %134 = vmatpush1.bf16.msra.mxu0 0
  %135 = vmatprep.subr.bf16.mxu0 0
  %136 = vmatpush1.bf16.msra.mxu0 0
  %137 = vmatprep.subr.bf16.mxu0 0
  %138 = vmatpush1.bf16.msra.mxu0 0
  %139 = vmatprep.subr.bf16.mxu0 0
  %140 = vmatpush1.bf16.msra.mxu0 0
  %141 = vmatprep.subr.bf16.mxu0 0
  %142 = vmatpush1.bf16.msra.mxu0 0
  %143 = vmatprep.subr.bf16.mxu0 0
  %144 = vmatpush1.bf16.msra.mxu0 0
  %145 = vmatprep.subr.bf16.mxu0 0
  %146 = vmatpush1.bf16.msra.mxu0 0
  %147 = vmatprep.subr.bf16.mxu0 0
  %148 = vmatpush1.bf16.msra.mxu0 0
  %149 = vmatprep.mubr.bf16.mxu0 0
  %150 = vmatmul.mubr.bf16.gmra.mrb[0].mxu0 %v87
  %v151 = vpop.f32.mrb[0].mxu0
  %v152 = vadd.f32 %v43, %v151
  %v153 = vpop.f32.mrb[0].mxu0
  %v154 = vpop.f32.mrb[0].mxu0
  %v155 = vadd.f32 %v43, %v154
  %v156 = vpop.f32.mrb[0].mxu0
  %157 = vmatprep.mubr.bf16.mxu0 0
  %158 = vmatmul.mubr.bf16.gmra.mrb[0].mxu0 %v90
  %v159 = vpop.f32.mrb[0].mxu0
  %v160 = vadd.f32 %v43, %v159
  %v161 = vpop.f32.mrb[0].mxu0
  %v162 = vpop.f32.mrb[0].mxu0
  %v163 = vadd.f32 %v43, %v162
  %v164 = vpop.f32.mrb[0].mxu0
  %165 = vmatprep.mubr.bf16.mxu0 0
  %166 = vmatmul.mubr.bf16.gmra.mrb[0].mxu0 %v93
  %v167 = vpop.f32.mrb[0].mxu0
  %v168 = vadd.f32 %v43, %v167
  %v169 = vpop.f32.mrb[0].mxu0
  %v170 = vpop.f32.mrb[0].mxu0
  %v171 = vadd.f32 %v43, %v170
  %v172 = vpop.f32.mrb[0].mxu0
  %173 = vmatprep.mubr.bf16.mxu0 0
  %174 = vmatmul.mubr.bf16.gmra.mrb[0].mxu0 %v96
  %v175 = vpop.f32.mrb[0].mxu0
  %v176 = vadd.f32 %v43, %v175
  %v177 = vpop.f32.mrb[0].mxu0
  %v178 = vpop.f32.mrb[0].mxu0
  %v179 = vadd.f32 %v43, %v178
  %v180 = vpop.f32.mrb[0].mxu0
  %181 = vmatprep.mubr.bf16.mxu0 0
  %182 = vmatmul.mubr.bf16.gmra.mrb[0].mxu0 %v99
  %v183 = vpop.f32.mrb[0].mxu0
  %v184 = vadd.f32 %v43, %v183
  %v185 = vpop.f32.mrb[0].mxu0
  %v186 = vpop.f32.mrb[0].mxu0
  %v187 = vadd.f32 %v43, %v186
  %v188 = vpop.f32.mrb[0].mxu0
  %189 = vmatprep.mubr.bf16.mxu0 0
  %190 = vmatmul.mubr.bf16.gmra.mrb[0].mxu0 %v102
  %v191 = vpop.f32.mrb[0].mxu0
  %v192 = vadd.f32 %v43, %v191
  %v193 = vpop.f32.mrb[0].mxu0
  %v194 = vpop.f32.mrb[0].mxu0
  %v195 = vadd.f32 %v43, %v194
  %v196 = vpop.f32.mrb[0].mxu0
  %197 = vmatprep.mubr.bf16.mxu0 0
  %198 = vmatmul.mubr.bf16.gmra.mrb[0].mxu0 %v105
  %v199 = vpop.f32.mrb[0].mxu0
  %v200 = vadd.f32 %v43, %v199
  %v201 = vpop.f32.mrb[0].mxu0
  %v202 = vpop.f32.mrb[0].mxu0
  %v203 = vadd.f32 %v43, %v202
  %v204 = vpop.f32.mrb[0].mxu0
  %205 = vmatprep.mubr.bf16.mxu0 0
  %206 = vmatmul.mubr.bf16.gmra.mrb[0].mxu0 %v108
  %v207 = vpop.f32.mrb[0].mxu0
  %v208 = vadd.f32 %v43, %v207
  %v209 = vpop.f32.mrb[0].mxu0
  %v210 = vpop.f32.mrb[0].mxu0
  %v211 = vadd.f32 %v43, %v210
  %v212 = vpop.f32.mrb[0].mxu0
  %213 = vdwg.mxu0
  %v214 = vmax.f32 %v152, 0.0
  %v215 = vmax.f32 %v155, 0.0
  %v216 = vmax.f32 %v160, 0.0
  %v217 = vmax.f32 %v163, 0.0
  %v218 = vmax.f32 %v168, 0.0
  %v219 = vmax.f32 %v171, 0.0
  %v220 = vmax.f32 %v176, 0.0
  %v221 = vmax.f32 %v179, 0.0
  %v222 = vmax.f32 %v184, 0.0
  %v223 = vmax.f32 %v187, 0.0
  %v224 = vmax.f32 %v192, 0.0
  %v225 = vmax.f32 %v195, 0.0
  %v226 = vmax.f32 %v200, 0.0
  %v227 = vmax.f32 %v203, 0.0
  %v228 = vmax.f32 %v208, 0.0
  %v229 = vmax.f32 %v211, 0.0
  %v230 = vpack.c.bf16 %v215, %v214
  %v231 = vpack.c.bf16 %v217, %v216
  %v232 = vpack.c.bf16 %v219, %v218
  %v233 = vpack.c.bf16 %v221, %v220
  %v234 = vpack.c.bf16 %v223, %v222
  %v235 = vpack.c.bf16 %v225, %v224
  %v236 = vpack.c.bf16 %v227, %v226
  %v237 = vpack.c.bf16 %v229, %v228
  %v238 = vld [vmem:[%s3] sm:$0xf]
  %v239 = vld [vmem:[%s3 + $0x4] sm:$0xf]
  %v240 = vld [vmem:[%s3 + $0x8] sm:$0xf]
  %v241 = vld [vmem:[%s3 + $0xc] sm:$0xf]
  %v242 = vld [vmem:[%s4] sm:$0x1]
  %v244 = vlaneseq
  %v245 = vshrl.u32 %v244, 7
  %v246 = vsub.s32 0, %v245
  %v247 = vrot.slane %v242, %v246
  %v253 = vunpack.c.l.b16 %v238
  %v254 = vunpack.c.l.b16 %v239
  %v255 = vunpack.c.l.b16 %v240
  %v256 = vunpack.c.l.b16 %v241
  %v257 = vpack.c.b16 %v254, %v253
  %v258 = vpack.c.b16 %v256, %v255
  %vm261 = vcmask 261120
  %v263 = vsel %vm261, %v230, 0
  %v266 = vsel %vm261, %v231, 0
  %v269 = vsel %vm261, %v232, 0
  %v272 = vsel %vm261, %v233, 0
  %v275 = vsel %vm261, %v234, 0
  %v278 = vsel %vm261, %v235, 0
  %v281 = vsel %vm261, %v236, 0
  %v284 = vsel %vm261, %v237, 0
  %286 = vmatprep.subr.bf16.mxu0 0
  %287 = vmatpush1.bf16.msra.mxu0 %v257
  %288 = vmatprep.subr.bf16.mxu0 0
  %289 = vmatpush1.bf16.msra.mxu0 %v258
  %290 = vmatprep.subr.bf16.mxu0 0
  %291 = vmatpush1.bf16.msra.mxu0 0
  %292 = vmatprep.subr.bf16.mxu0 0
  %293 = vmatpush1.bf16.msra.mxu0 0
  %294 = vmatprep.subr.bf16.mxu0 0
  %295 = vmatpush1.bf16.msra.mxu0 0
  %296 = vmatprep.subr.bf16.mxu0 0
  %297 = vmatpush1.bf16.msra.mxu0 0
  %298 = vmatprep.subr.bf16.mxu0 0
  %299 = vmatpush1.bf16.msra.mxu0 0
  %300 = vmatprep.subr.bf16.mxu0 0
  %301 = vmatpush1.bf16.msra.mxu0 0
  %302 = vmatprep.subr.bf16.mxu0 0
  %303 = vmatpush1.bf16.msra.mxu0 0
  %304 = vmatprep.subr.bf16.mxu0 0
  %305 = vmatpush1.bf16.msra.mxu0 0
  %306 = vmatprep.subr.bf16.mxu0 0
  %307 = vmatpush1.bf16.msra.mxu0 0
  %308 = vmatprep.subr.bf16.mxu0 0
  %309 = vmatpush1.bf16.msra.mxu0 0
  %310 = vmatprep.subr.bf16.mxu0 0
  %311 = vmatpush1.bf16.msra.mxu0 0
  %312 = vmatprep.subr.bf16.mxu0 0
  %313 = vmatpush1.bf16.msra.mxu0 0
  %314 = vmatprep.subr.bf16.mxu0 0
  %315 = vmatpush1.bf16.msra.mxu0 0
  %316 = vmatprep.subr.bf16.mxu0 0
  %317 = vmatpush1.bf16.msra.mxu0 0
  %318 = vmatprep.mubr.bf16.mxu0 0
  %319 = vmatmul.mubr.bf16.gmra.mrb[0].mxu0 %v263
  %v320 = vpop.f32.mrb[0].mxu0
  %v321 = vadd.f32 %v247, %v320
  %v322 = vpop.f32.mrb[0].mxu0
  %v323 = vpop.f32.mrb[0].mxu0
  %v324 = vadd.f32 %v247, %v323
  %v325 = vpop.f32.mrb[0].mxu0
  %326 = vmatprep.mubr.bf16.mxu0 0
  %327 = vmatmul.mubr.bf16.gmra.mrb[0].mxu0 %v266
  %v328 = vpop.f32.mrb[0].mxu0
  %v329 = vadd.f32 %v247, %v328
  %v330 = vpop.f32.mrb[0].mxu0
  %v331 = vpop.f32.mrb[0].mxu0
  %v332 = vadd.f32 %v247, %v331
  %v333 = vpop.f32.mrb[0].mxu0
  %334 = vmatprep.mubr.bf16.mxu0 0
  %335 = vmatmul.mubr.bf16.gmra.mrb[0].mxu0 %v269
  %v336 = vpop.f32.mrb[0].mxu0
  %v337 = vadd.f32 %v247, %v336
  %v338 = vpop.f32.mrb[0].mxu0
  %v339 = vpop.f32.mrb[0].mxu0
  %v340 = vadd.f32 %v247, %v339
  %v341 = vpop.f32.mrb[0].mxu0
  %342 = vmatprep.mubr.bf16.mxu0 0
  %343 = vmatmul.mubr.bf16.gmra.mrb[0].mxu0 %v272
  %v344 = vpop.f32.mrb[0].mxu0
  %v345 = vadd.f32 %v247, %v344
  %v346 = vpop.f32.mrb[0].mxu0
  %v347 = vpop.f32.mrb[0].mxu0
  %v348 = vadd.f32 %v247, %v347
  %v349 = vpop.f32.mrb[0].mxu0
  %350 = vmatprep.mubr.bf16.mxu0 0
  %351 = vmatmul.mubr.bf16.gmra.mrb[0].mxu0 %v275
  %v352 = vpop.f32.mrb[0].mxu0
  %v353 = vadd.f32 %v247, %v352
  %v354 = vpop.f32.mrb[0].mxu0
  %v355 = vpop.f32.mrb[0].mxu0
  %v356 = vadd.f32 %v247, %v355
  %v357 = vpop.f32.mrb[0].mxu0
  %358 = vmatprep.mubr.bf16.mxu0 0
  %359 = vmatmul.mubr.bf16.gmra.mrb[0].mxu0 %v278
  %v360 = vpop.f32.mrb[0].mxu0
  %v361 = vadd.f32 %v247, %v360
  %v362 = vpop.f32.mrb[0].mxu0
  %v363 = vpop.f32.mrb[0].mxu0
  %v364 = vadd.f32 %v247, %v363
  %v365 = vpop.f32.mrb[0].mxu0
  %366 = vmatprep.mubr.bf16.mxu0 0
  %367 = vmatmul.mubr.bf16.gmra.mrb[0].mxu0 %v281
  %v368 = vpop.f32.mrb[0].mxu0
  %v369 = vadd.f32 %v247, %v368
  %v370 = vpop.f32.mrb[0].mxu0
  %v371 = vpop.f32.mrb[0].mxu0
  %v372 = vadd.f32 %v247, %v371
  %v373 = vpop.f32.mrb[0].mxu0
  %374 = vmatprep.mubr.bf16.mxu0 0
  %375 = vmatmul.mubr.bf16.gmra.mrb[0].mxu0 %v284
  %v376 = vpop.f32.mrb[0].mxu0
  %v377 = vadd.f32 %v247, %v376
  %v378 = vpop.f32.mrb[0].mxu0
  %v379 = vpop.f32.mrb[0].mxu0
  %v380 = vadd.f32 %v247, %v379
  %v381 = vpop.f32.mrb[0].mxu0
  %382 = vdwg.mxu0
  %v383 = vpack.c.bf16 %v324, %v321
  %v384 = vpack.c.bf16 %v332, %v329
  %v385 = vpack.c.bf16 %v340, %v337
  %v386 = vpack.c.bf16 %v348, %v345
  %v387 = vpack.c.bf16 %v356, %v353
  %v388 = vpack.c.bf16 %v364, %v361
  %v389 = vpack.c.bf16 %v372, %v369
  %v390 = vpack.c.bf16 %v380, %v377
  %v399 = vunpack.c.l.b16 %v383
  %v400 = vunpack.c.h.b16 %v383
  %v401 = vunpack.c.l.b16 %v384
  %v402 = vunpack.c.h.b16 %v384
  %v403 = vunpack.c.l.b16 %v385
  %v404 = vunpack.c.h.b16 %v385
  %v405 = vunpack.c.l.b16 %v386
  %v406 = vunpack.c.h.b16 %v386
  %v407 = vunpack.c.l.b16 %v387
  %v408 = vunpack.c.h.b16 %v387
  %v409 = vunpack.c.l.b16 %v388
  %v410 = vunpack.c.h.b16 %v388
  %v411 = vunpack.c.l.b16 %v389
  %v412 = vunpack.c.h.b16 %v389
  %v413 = vunpack.c.l.b16 %v390
  %v414 = vunpack.c.h.b16 %v390
  %v415 = vpack.c.b16 %v399, %v399
  %v416 = vpack.c.b16 %v400, %v400
  %v417 = vpack.c.b16 %v401, %v401
  %v418 = vpack.c.b16 %v402, %v402
  %v419 = vpack.c.b16 %v403, %v403
  %v420 = vpack.c.b16 %v404, %v404
  %v421 = vpack.c.b16 %v405, %v405
  %v422 = vpack.c.b16 %v406, %v406
  %v423 = vpack.c.b16 %v407, %v407
  %v424 = vpack.c.b16 %v408, %v408
  %v425 = vpack.c.b16 %v409, %v409
  %v426 = vpack.c.b16 %v410, %v410
  %v427 = vpack.c.b16 %v411, %v411
  %v428 = vpack.c.b16 %v412, %v412
  %v429 = vpack.c.b16 %v413, %v413
  %v430 = vpack.c.b16 %v414, %v414
  %vm447 = vcmask 257024
  %448 = vst.msk [vmem:[%s5] sm:$0xf] %vm447, %v415
  %449 = vst.msk [vmem:[%s5 + $0x4] sm:$0xf] %vm447, %v416
  %450 = vst.msk [vmem:[%s5 + $0x8] sm:$0xf] %vm447, %v417
  %451 = vst.msk [vmem:[%s5 + $0xc] sm:$0xf] %vm447, %v418
  %452 = vst.msk [vmem:[%s5 + $0x10] sm:$0xf] %vm447, %v419
  %453 = vst.msk [vmem:[%s5 + $0x14] sm:$0xf] %vm447, %v420
  %454 = vst.msk [vmem:[%s5 + $0x18] sm:$0xf] %vm447, %v421
  %455 = vst.msk [vmem:[%s5 + $0x1c] sm:$0xf] %vm447, %v422
  %456 = vst.msk [vmem:[%s5 + $0x20] sm:$0xf] %vm447, %v423
  %457 = vst.msk [vmem:[%s5 + $0x24] sm:$0xf] %vm447, %v424
  %458 = vst.msk [vmem:[%s5 + $0x28] sm:$0xf] %vm447, %v425
  %459 = vst.msk [vmem:[%s5 + $0x2c] sm:$0xf] %vm447, %v426
  %460 = vst.msk [vmem:[%s5 + $0x30] sm:$0xf] %vm447, %v427
  %461 = vst.msk [vmem:[%s5 + $0x34] sm:$0xf] %vm447, %v428
  %462 = vst.msk [vmem:[%s5 + $0x38] sm:$0xf] %vm447, %v429
  %463 = vst.msk [vmem:[%s5 + $0x3c] sm:$0xf] %vm447, %v430
  // Predicated region
  $region22: #{tpu_custom_call.1} parent=0 // pred_check
    _
  $region23: #{tpu_custom_call.1} parent=0 // pred_check_branch
    %465 = sbr.rel (0) target = $region25
  $region24: #{tpu_custom_call.1} parent=0 // pred_region
    _
  $region25: #{tpu_custom_call.1} parent=0 // pred_fallthru
    _
  // Predicated region
  $region26: #{tpu_custom_call.1} parent=0 // pred_check
    _
  $region27: #{tpu_custom_call.1} parent=0 // pred_check_branch
    %467 = sbr.rel (0) target = $region29
  $region28: #{tpu_custom_call.1} parent=0 // pred_region
    _
  $region29: #{tpu_custom_call.1} parent=0 // pred_fallthru
    _

</llo_original>
